<compile_context>
chip_gen: v5e
topology: v5e:2x2
jax: 0.10.0
libtpu: 0.0.40
codegen_flags: <defaults>
</compile_context>

<pallas_src>
import functools

import jax
import jax.numpy as jnp
from jax.experimental import pallas as pl
from jax.experimental.pallas import tpu as pltpu


def _round_up(v, m):
    return ((v + m - 1) // m) * m


# ---------------------------------------------------------------------------
# Fused image-branch kernel
# ---------------------------------------------------------------------------
def _qan_fused_kernel(x_ref, convwt_ref, convb_ref, featwt_ref, featb_ref,
                      clswt_ref, clsb_ref, qwt_ref, qb_ref, out_ref, acc_ref,
                      *, s_total, needs_mask):
    s = pl.program_id(1)
    ns = pl.num_programs(1)
    ts = x_ref.shape[-1]

    @pl.when(s == 0)
    def _init():
        acc_ref[...] = jnp.zeros_like(acc_ref)

    # 1x1 conv + ReLU on this (C, ts) spatial tile: one MXU push, bf16 inputs,
    # f32 accumulation.  middle_feature stays on-chip.
    xt = x_ref[...]                                   # (C, ts) bf16
    w_t = convwt_ref[...]                             # (C_mid, C) bf16
    mid = jnp.dot(w_t, xt, preferred_element_type=jnp.float32)
    mid = jnp.maximum(mid + convb_ref[...].astype(jnp.float32), 0.0)

    if needs_mask:
        # Ragged tail: zero out columns beyond the true spatial extent so the
        # padded (undefined) block region never reaches the GAP accumulator.
        col = s * ts + jax.lax.broadcasted_iota(jnp.int32, (1, ts), 1)
        mid = jnp.where(col < s_total, mid, 0.0)

    # Deferred reduction: fold ts lanes -> 128 lanes with pure vreg adds
    # (static 128-aligned lane slices), then a single unmasked full-ref
    # accumulate.  The only cross-lane reduce happens in the finalize block.
    fold = mid[:, 0:128]
    for j in range(1, ts // 128):
        fold = fold + mid[:, j * 128:(j + 1) * 128]
    acc_ref[...] += fold

    @pl.when(s == ns - 1)
    def _finalize():
        inv_s = 1.0 / float(s_total)
        pooled = jnp.sum(acc_ref[...], axis=1, keepdims=True) * inv_s  # (C_mid, 1)

        feat_wt = featwt_ref[...].astype(jnp.float32)  # (F, C_mid)
        feat_b = featb_ref[...].astype(jnp.float32)    # (F, 1)
        cls_wt = clswt_ref[...].astype(jnp.float32)    # (NC, F)
        cls_b = clsb_ref[...].astype(jnp.float32)      # (NC, 1)
        q_wt = qwt_ref[...].astype(jnp.float32)        # (1, C_mid)
        q_b = qb_ref[...].astype(jnp.float32)          # (1, 1)

        # image_feature = relu(GAP @ feat_w + b)  (column form, this batch row)
        img = jnp.maximum(
            jnp.dot(feat_wt, pooled, preferred_element_type=jnp.float32) + feat_b,
            0.0)                                       # (F, 1)
        # classifier head
        y = jnp.dot(cls_wt, img, preferred_element_type=jnp.float32) + cls_b  # (NC, 1)
        # quality head on the SAME pooled features (duplicate GAP removed)
        q = jax.nn.sigmoid(
            jnp.dot(q_wt, pooled, preferred_element_type=jnp.float32) + q_b)  # (1, 1)

        nc = y.shape[0]
        f = img.shape[0]
        # Packed per-row result; three tiny stores, executed once per batch row.
        out_ref[0:nc, :] = y.astype(out_ref.dtype)
        out_ref[nc:nc + f, :] = img.astype(out_ref.dtype)
        out_ref[nc + f:nc + f + 1, :] = q.astype(out_ref.dtype)


def qan_image_branch(params, x3, *, max_spatial_tile=2048):
    """Fused base_model + feature_model + quality_model for image input.

    x3: [B, C, S] (NCHW flattened along the spatial dims), ideally bf16.
    Returns a packed [B, n_cls + feat_dim + 1] slab.
    """
    B, C, S = x3.shape
    c_mid = params["conv_w"].shape[1]
    f_dim = params["feat_w"].shape[1]
    n_cls = params["cls_w"].shape[1]
    out_rows = n_cls + f_dim + 1

    # Largest lane-aligned spatial tile up to the cap; ragged tails are handled
    # with cdiv + in-kernel masking (no whole-S fallback, no compile-time OOM
    # risk on v7x's 64 MiB VMEM).  At C=4 even a 2048 tile is only ~16 KiB of
    # bf16 per buffer, so the double-buffered working set stays tiny.
    cap = max(128, (max_spatial_tile // 128) * 128)
    ts = min(_round_up(S, 128), cap)
    ns = pl.cdiv(S, ts)
    needs_mask = (S % ts) != 0

    # Kernel-friendly operand layouts (tiny one-time reshapes / casts on the
    # parameters only; x is not copied).
    conv_wt = params["conv_w"].T.astype(jnp.bfloat16)   # (C_mid, C)
    conv_b = params["conv_b"].reshape(c_mid, 1)          # f32
    feat_wt = params["feat_w"].T                          # (F, C_mid)
    feat_b = params["feat_b"].reshape(f_dim, 1)
    cls_wt = params["cls_w"].T                            # (NC, F)
    cls_b = params["cls_b"].reshape(n_cls, 1)
    q_wt = params["q_w"].T                                # (1, C_mid)
    q_b = params["q_b"].reshape(1, 1)

    kernel = functools.partial(_qan_fused_kernel, s_total=S, needs_mask=needs_mask)

    small_bytes = sum(int(a.size) * 4 for a in
                      (conv_b, feat_wt, feat_b, cls_wt, cls_b, q_wt, q_b))
    cost = pl.CostEstimate(
        flops=2 * B * S * C * c_mid
              + 2 * B * (c_mid * f_dim + f_dim * n_cls + c_mid),
        transcendentals=B,
        bytes_accessed=int(x3.size) * x3.dtype.itemsize
                       + int(conv_wt.size) * 2 + small_bytes + B * out_rows * 4)

    out = pl.pallas_call(
        kernel,
        out_shape=jax.ShapeDtypeStruct((B, out_rows, 1), jnp.float32),
        grid_spec=pltpu.PrefetchScalarGridSpec(
            num_scalar_prefetch=0,
            grid=(B, ns),                                    # (parallel, reduction)
            in_specs=[
                pl.BlockSpec((None, C, ts), lambda b, s: (b, 0, s)),   # x tiles
                pl.BlockSpec((c_mid, C), lambda b, s: (0, 0)),         # conv_w^T (bf16)
                pl.BlockSpec((c_mid, 1), lambda b, s: (0, 0)),         # conv_b
                pl.BlockSpec((f_dim, c_mid), lambda b, s: (0, 0)),     # feat_w^T
                pl.BlockSpec((f_dim, 1), lambda b, s: (0, 0)),         # feat_b
                pl.BlockSpec((n_cls, f_dim), lambda b, s: (0, 0)),     # cls_w^T
                pl.BlockSpec((n_cls, 1), lambda b, s: (0, 0)),         # cls_b
                pl.BlockSpec((1, c_mid), lambda b, s: (0, 0)),         # q_w^T
                pl.BlockSpec((1, 1), lambda b, s: (0, 0)),             # q_b
            ],
            out_specs=pl.BlockSpec((None, out_rows, 1), lambda b, s: (b, 0, 0)),
            # Lane-wide deferred-GAP accumulator (16 KiB).
            scratch_shapes=[pltpu.VMEM((c_mid, 128), jnp.float32)],
        ),
        compiler_params=pltpu.CompilerParams(
            dimension_semantics=("parallel", "arbitrary"),
            # Explicit scoped-VMEM budget: plenty for the double-buffered
            # bf16 tiles + accumulator, and safely under v7x's 64 MiB physical
            # VMEM while lifting v5e's 16 MiB default.
            vmem_limit_bytes=32 * 1024 * 1024),
        cost_estimate=cost,
    )(x3, conv_wt, conv_b, feat_wt, feat_b, cls_wt, cls_b, q_wt, q_b)
    return out.reshape(B, out_rows)


# ---------------------------------------------------------------------------
# Deterministic synthetic parameters (shapes implied by the forward pass)
# ---------------------------------------------------------------------------
def init_params(c_in=4, c_mid=32, feat_dim=32, num_classes=8):
    key = jax.random.PRNGKey(0)
    ks = jax.random.split(key, 4)
    return {
        # base_model: 1x1 conv (C_in -> C_mid) + ReLU, then GAP + linear
        "conv_w": 0.1 * jax.random.normal(ks[0], (c_in, c_mid), jnp.float32),
        "conv_b": jnp.zeros((c_mid,), jnp.float32),
        "feat_w": 0.1 * jax.random.normal(ks[1], (c_mid, feat_dim), jnp.float32),
        "feat_b": jnp.zeros((feat_dim,), jnp.float32),
        # feature_model: classifier head (feat_dim -> num_classes)
        "cls_w": 0.1 * jax.random.normal(ks[2], (feat_dim, num_classes), jnp.float32),
        "cls_b": jnp.zeros((num_classes,), jnp.float32),
        # quality_model: GAP(middle) + linear -> sigmoid score
        "q_w": 0.1 * jax.random.normal(ks[3], (c_mid, 1), jnp.float32),
        "q_b": jnp.zeros((1,), jnp.float32),
    }


# ---------------------------------------------------------------------------
# QAN forward (mirrors the PyTorch control flow)
# ---------------------------------------------------------------------------
def qan_forward(params, x, *, max_spatial_tile=2048):
    if x.ndim > 2:
        B, C, H, W = x.shape
        x3 = x.reshape(B, C, H * W)                 # native NCHW flatten (free)
        if x3.dtype != jnp.bfloat16:
            # For peak bandwidth the producer should emit bf16 directly; this
            # one-time cast is a pragmatic fallback for f32 inputs.
            x3 = x3.astype(jnp.bfloat16)
        packed = qan_image_branch(params, x3, max_spatial_tile=max_spatial_tile)
        n_cls = params["cls_w"].shape[1]
        f_dim = params["feat_w"].shape[1]
        y = packed[:, :n_cls]
        image_feature = packed[:, n_cls:n_cls + f_dim]
        score = packed[:, n_cls + f_dim:n_cls + f_dim + 1]
        return y, image_feature, score
    else:
        # feature_model(x): x is already an image_feature batch [B, feat_dim].
        # Deliberately NOT a pallas_call: a sub-KiB (B,32)@(32,8) matmul is
        # pure launch/DMA overhead as a kernel (perf review); XLA handles it.
        y = jnp.dot(x.astype(jnp.float32), params["cls_w"]) + params["cls_b"]
        return y, x


# ---------------------------------------------------------------------------
# Plain-JAX reference (for correctness check; mirrors bf16 input quantization)
# ---------------------------------------------------------------------------
def _reference(params, x):
    B, C = x.shape[0], x.shape[1]
    S = x.shape[2] * x.shape[3]
    hp = jax.lax.Precision.HIGHEST
    xf = x.reshape(B, C, S).astype(jnp.bfloat16).astype(jnp.float32)
    w = params["conv_w"].astype(jnp.bfloat16).astype(jnp.float32)
    mid = jax.nn.relu(
        jnp.einsum("bcs,cm->bms", xf, w, precision=hp)
        + params["conv_b"][None, :, None])                       # [B, C_mid, S]
    pooled = mid.mean(axis=2)                                     # [B, C_mid]
    img = jax.nn.relu(
        jnp.dot(pooled, params["feat_w"], precision=hp) + params["feat_b"])
    y = jnp.dot(img, params["cls_w"], precision=hp) + params["cls_b"]
    score = jax.nn.sigmoid(
        jnp.dot(pooled, params["q_w"], precision=hp) + params["q_b"])
    return y, img, score


if __name__ == "__main__":
    B, C, H, W = 2, 4, 16, 16
    key = jax.random.PRNGKey(0)
    params = init_params(c_in=C, c_mid=32, feat_dim=32, num_classes=8)

    # --- branch 1: image input (ndim > 2), single fused kernel launch -------
    x = jax.random.normal(key, (B, C, H, W), jnp.float32).astype(jnp.bfloat16)
    y, image_feature, score = qan_forward(params, x)
    jax.block_until_ready((y, image_feature, score))
    assert y.shape == (B, 8)
    assert image_feature.shape == (B, 32)
    assert score.shape == (B, 1)

    y_ref, img_ref, score_ref = _reference(params, x)
    assert jnp.allclose(y, y_ref, atol=1e-3, rtol=1e-3)
    assert jnp.allclose(image_feature, img_ref, atol=1e-3, rtol=1e-3)
    assert jnp.allclose(score, score_ref, atol=1e-3, rtol=1e-3)

    # --- ragged spatial extent (S=400, not a multiple of 128): exercises the
    # cdiv + masking path, and (with a small forced tile) multi-step GAP
    # accumulation in the lane-wide scratch. ---------------------------------
    key2 = jax.random.PRNGKey(0)
    x2 = jax.random.normal(key2, (B, C, 20, 20), jnp.float32).astype(jnp.bfloat16)
    y2_ref, img2_ref, score2_ref = _reference(params, x2)
    for tile in (2048, 128):
        y2, img2, score2 = qan_forward(params, x2, max_spatial_tile=tile)
        jax.block_until_ready((y2, img2, score2))
        assert jnp.allclose(y2, y2_ref, atol=1e-3, rtol=1e-3)
        assert jnp.allclose(img2, img2_ref, atol=1e-3, rtol=1e-3)
        assert jnp.allclose(score2, score2_ref, atol=1e-3, rtol=1e-3)

    # --- branch 2: already-extracted feature input (ndim == 2) --------------
    yf, featf = qan_forward(params, image_feature)
    jax.block_until_ready((yf, featf))
    assert yf.shape == (B, 8)
    yf_ref = jnp.dot(image_feature, params["cls_w"]) + params["cls_b"]
    assert jnp.allclose(yf, yf_ref, atol=1e-4, rtol=1e-4)

    print("KERNEL_OK")
</pallas_src>

<mosaic_0001>
module attributes {stable_mosaic.version = 11 : i64} {
  func.func @_qan_fused_kernel(%arg0: i32, %arg1: i32, %arg2: memref<1x4x256xbf16, #tpu.memory_space<vmem>>, %arg3: memref<32x4xbf16, #tpu.memory_space<vmem>>, %arg4: memref<32x1xf32, #tpu.memory_space<vmem>>, %arg5: memref<32x32xf32, #tpu.memory_space<vmem>>, %arg6: memref<32x1xf32, #tpu.memory_space<vmem>>, %arg7: memref<8x32xf32, #tpu.memory_space<vmem>>, %arg8: memref<8x1xf32, #tpu.memory_space<vmem>>, %arg9: memref<1x32xf32, #tpu.memory_space<vmem>>, %arg10: memref<1x1xf32, #tpu.memory_space<vmem>>, %arg11: memref<1x41x1xf32, #tpu.memory_space<vmem>>, %arg12: memref<32x128xf32, #tpu.memory_space<vmem>>) attributes {dimension_semantics = [#tpu.dimension_semantics<parallel>, #tpu.dimension_semantics<arbitrary>], iteration_bounds = array<i64: 2, 1>, scalar_prefetch = 0 : i64, scratch_operands = 1 : i64, tpu.core_type = #tpu.core_type<tc>, window_params = [{transform_indices = @transform_0, window_bounds = array<i64: 1, 4, 256>}, {pipeline_mode = #tpu.pipeline_mode<synchronous>, transform_indices = @transform_1, window_bounds = array<i64: 32, 4>}, {pipeline_mode = #tpu.pipeline_mode<synchronous>, transform_indices = @transform_2, window_bounds = array<i64: 32, 1>}, {pipeline_mode = #tpu.pipeline_mode<synchronous>, transform_indices = @transform_3, window_bounds = array<i64: 32, 32>}, {pipeline_mode = #tpu.pipeline_mode<synchronous>, transform_indices = @transform_4, window_bounds = array<i64: 32, 1>}, {pipeline_mode = #tpu.pipeline_mode<synchronous>, transform_indices = @transform_5, window_bounds = array<i64: 8, 32>}, {pipeline_mode = #tpu.pipeline_mode<synchronous>, transform_indices = @transform_6, window_bounds = array<i64: 8, 1>}, {pipeline_mode = #tpu.pipeline_mode<synchronous>, transform_indices = @transform_7, window_bounds = array<i64: 1, 32>}, {pipeline_mode = #tpu.pipeline_mode<synchronous>, transform_indices = @transform_8, window_bounds = array<i64: 1, 1>}, {transform_indices = @transform_9, window_bounds = array<i64: 1, 41, 1>}]} {
    %c0_i32 = arith.constant 0 : i32
    %0 = arith.cmpi eq, %arg1, %c0_i32 : i32
    %1 = arith.extui %0 : i1 to i32
    %c0_i32_0 = arith.constant 0 : i32
    %2 = arith.cmpi ne, %1, %c0_i32_0 : i32
    scf.if %2 {
      %cst_14 = arith.constant 0.000000e+00 : f32
      %21 = vector.broadcast %cst_14 : f32 to vector<32x128xf32>
      %c0_15 = arith.constant 0 : index
      %c0_16 = arith.constant 0 : index
      %22 = vector.load %arg12[%c0_15, %c0_16] : memref<32x128xf32, #tpu.memory_space<vmem>>, vector<32x128xf32>
      tpu.vector_store %arg12[%c0_15, %c0_16], %21 {strides = array<i32>} : memref<32x128xf32, #tpu.memory_space<vmem>>, vector<32x128xf32>,
    } else {
    }
    %c0 = arith.constant 0 : index
    %c0_1 = arith.constant 0 : index
    %c0_2 = arith.constant 0 : index
    %3 = vector.load %arg2[%c0, %c0_1, %c0_2] : memref<1x4x256xbf16, #tpu.memory_space<vmem>>, vector<1x4x256xbf16>
    %4 = vector.shape_cast %3 : vector<1x4x256xbf16> to vector<4x256xbf16>
    %c0_3 = arith.constant 0 : index
    %c0_4 = arith.constant 0 : index
    %5 = vector.load %arg3[%c0_3, %c0_4] : memref<32x4xbf16, #tpu.memory_space<vmem>>, vector<32x4xbf16>
    %cst = arith.constant dense<0.000000e+00> : vector<32x256xf32>
    %6 = tpu.matmul %5, %4, %cst {dimension_numbers = #tpu.dot_dimension_numbers<[1], [0], [0], [1], [0, 0, 1, 1], [], []>} : vector<32x4xbf16>, vector<4x256xbf16>, vector<32x256xf32> -> vector<32x256xf32>
    %c0_5 = arith.constant 0 : index
    %c0_6 = arith.constant 0 : index
    %7 = vector.load %arg4[%c0_5, %c0_6] : memref<32x1xf32, #tpu.memory_space<vmem>>, vector<32x1xf32>
    %8 = vector.broadcast %7 : vector<32x1xf32> to vector<32x256xf32>
    %9 = arith.addf %6, %8 : vector<32x256xf32>
    %cst_7 = arith.constant 0.000000e+00 : f32
    %10 = vector.broadcast %cst_7 : f32 to vector<32x256xf32>
    %11 = arith.maximumf %9, %10 : vector<32x256xf32>
    %12 = vector.extract_strided_slice %11 {offsets = [0, 0], sizes = [32, 128], strides = [1, 1]} : vector<32x256xf32> to vector<32x128xf32>
    %13 = vector.extract_strided_slice %11 {offsets = [0, 128], sizes = [32, 128], strides = [1, 1]} : vector<32x256xf32> to vector<32x128xf32>
    %14 = arith.addf %12, %13 : vector<32x128xf32>
    %c0_8 = arith.constant 0 : index
    %c0_9 = arith.constant 0 : index
    %15 = vector.load %arg12[%c0_8, %c0_9] : memref<32x128xf32, #tpu.memory_space<vmem>>, vector<32x128xf32>
    %16 = arith.addf %15, %14 : vector<32x128xf32>
    %c0_10 = arith.constant 0 : index
    %c0_11 = arith.constant 0 : index
    %17 = vector.load %arg12[%c0_10, %c0_11] : memref<32x128xf32, #tpu.memory_space<vmem>>, vector<32x128xf32>
    tpu.vector_store %arg12[%c0_10, %c0_11], %16 {strides = array<i32>} : memref<32x128xf32, #tpu.memory_space<vmem>>, vector<32x128xf32>,
    %c0_i32_12 = arith.constant 0 : i32
    %18 = arith.cmpi eq, %arg1, %c0_i32_12 : i32
    %19 = arith.extui %18 : i1 to i32
    %c0_i32_13 = arith.constant 0 : i32
    %20 = arith.cmpi ne, %19, %c0_i32_13 : i32
    scf.if %20 {
      %c0_14 = arith.constant 0 : index
      %c0_15 = arith.constant 0 : index
      %21 = vector.load %arg12[%c0_14, %c0_15] : memref<32x128xf32, #tpu.memory_space<vmem>>, vector<32x128xf32>
      %cst_16 = arith.constant dense<0.000000e+00> : vector<32xf32>
      %22 = vector.multi_reduction <add>, %21, %cst_16 [1] : vector<32x128xf32> to vector<32xf32>
      %23 = vector.shape_cast %22 : vector<32xf32> to vector<32x1xf32>
      %cst_17 = arith.constant 3.906250e-03 : f32
      %24 = vector.broadcast %cst_17 : f32 to vector<32x1xf32>
      %25 = arith.mulf %23, %24 : vector<32x1xf32>
      %c0_18 = arith.constant 0 : index
      %c0_19 = arith.constant 0 : index
      %26 = vector.load %arg5[%c0_18, %c0_19] : memref<32x32xf32, #tpu.memory_space<vmem>>, vector<32x32xf32>
      %c0_20 = arith.constant 0 : index
      %c0_21 = arith.constant 0 : index
      %27 = vector.load %arg6[%c0_20, %c0_21] : memref<32x1xf32, #tpu.memory_space<vmem>>, vector<32x1xf32>
      %c0_22 = arith.constant 0 : index
      %c0_23 = arith.constant 0 : index
      %28 = vector.load %arg7[%c0_22, %c0_23] : memref<8x32xf32, #tpu.memory_space<vmem>>, vector<8x32xf32>
      %c0_24 = arith.constant 0 : index
      %c0_25 = arith.constant 0 : index
      %29 = vector.load %arg8[%c0_24, %c0_25] : memref<8x1xf32, #tpu.memory_space<vmem>>, vector<8x1xf32>
      %c0_26 = arith.constant 0 : index
      %c0_27 = arith.constant 0 : index
      %30 = vector.load %arg9[%c0_26, %c0_27] : memref<1x32xf32, #tpu.memory_space<vmem>>, vector<1x32xf32>
      %c0_28 = arith.constant 0 : index
      %c0_29 = arith.constant 0 : index
      %31 = vector.load %arg10[%c0_28, %c0_29] : memref<1x1xf32, #tpu.memory_space<vmem>>, vector<1x1xf32>
      %cst_30 = arith.constant dense<0.000000e+00> : vector<32x1xf32>
      %32 = tpu.matmul %26, %25, %cst_30 {dimension_numbers = #tpu.dot_dimension_numbers<[1], [0], [0], [1], [0, 0, 1, 1], [], []>} : vector<32x32xf32>, vector<32x1xf32>, vector<32x1xf32> -> vector<32x1xf32>
      %33 = arith.addf %32, %27 : vector<32x1xf32>
      %cst_31 = arith.constant 0.000000e+00 : f32
      %34 = vector.broadcast %cst_31 : f32 to vector<32x1xf32>
      %35 = arith.maximumf %33, %34 : vector<32x1xf32>
      %cst_32 = arith.constant dense<0.000000e+00> : vector<8x1xf32>
      %36 = tpu.matmul %28, %35, %cst_32 {dimension_numbers = #tpu.dot_dimension_numbers<[1], [0], [0], [1], [0, 0, 1, 1], [], []>} : vector<8x32xf32>, vector<32x1xf32>, vector<8x1xf32> -> vector<8x1xf32>
      %37 = arith.addf %36, %29 : vector<8x1xf32>
      %cst_33 = arith.constant dense<0.000000e+00> : vector<1x1xf32>
      %38 = tpu.matmul %30, %25, %cst_33 {dimension_numbers = #tpu.dot_dimension_numbers<[1], [0], [0], [1], [0, 0, 1, 1], [], []>} : vector<1x32xf32>, vector<32x1xf32>, vector<1x1xf32> -> vector<1x1xf32>
      %39 = arith.addf %38, %31 : vector<1x1xf32>
      %40 = arith.negf %39 : vector<1x1xf32>
      %41 = math.exp %40 : vector<1x1xf32>
      %cst_34 = arith.constant 1.000000e+00 : f32
      %42 = vector.broadcast %cst_34 : f32 to vector<1x1xf32>
      %43 = arith.addf %42, %41 : vector<1x1xf32>
      %44 = arith.divf %42, %43 : vector<1x1xf32>
      %c0_35 = arith.constant 0 : index
      %c0_36 = arith.constant 0 : index
      %c0_37 = arith.constant 0 : index
      %45 = vector.load %arg11[%c0_35, %c0_36, %c0_37] : memref<1x41x1xf32, #tpu.memory_space<vmem>>, vector<1x8x1xf32>
      %46 = vector.shape_cast %45 : vector<1x8x1xf32> to vector<8x1xf32>
      %47 = vector.shape_cast %37 : vector<8x1xf32> to vector<1x8x1xf32>
      tpu.vector_store %arg11[%c0_35, %c0_36, %c0_37], %47 {strides = array<i32>} : memref<1x41x1xf32, #tpu.memory_space<vmem>>, vector<1x8x1xf32>,
      %c0_38 = arith.constant 0 : index
      %c8 = arith.constant 8 : index
      %c0_39 = arith.constant 0 : index
      %48 = vector.load %arg11[%c0_38, %c8, %c0_39] : memref<1x41x1xf32, #tpu.memory_space<vmem>>, vector<1x32x1xf32>
      %49 = vector.shape_cast %48 : vector<1x32x1xf32> to vector<32x1xf32>
      %50 = vector.shape_cast %35 : vector<32x1xf32> to vector<1x32x1xf32>
      tpu.vector_store %arg11[%c0_38, %c8, %c0_39], %50 {strides = array<i32>} : memref<1x41x1xf32, #tpu.memory_space<vmem>>, vector<1x32x1xf32>,
      %c0_40 = arith.constant 0 : index
      %c40 = arith.constant 40 : index
      %c0_41 = arith.constant 0 : index
      %51 = vector.load %arg11[%c0_40, %c40, %c0_41] : memref<1x41x1xf32, #tpu.memory_space<vmem>>, vector<1x1x1xf32>
      %52 = vector.shape_cast %51 : vector<1x1x1xf32> to vector<1x1xf32>
      %53 = vector.shape_cast %44 : vector<1x1xf32> to vector<1x1x1xf32>
      tpu.vector_store %arg11[%c0_40, %c40, %c0_41], %53 {strides = array<i32>} : memref<1x41x1xf32, #tpu.memory_space<vmem>>, vector<1x1x1xf32>,
    } else {
    }
    return
  }
  func.func @transform_0(%arg0: i32, %arg1: i32) -> (i32, i32, i32) {
    %c0_i32 = arith.constant 0 : i32
    %c0_i32_0 = arith.constant 0 : i32
    return %arg0, %c0_i32, %arg1 : i32, i32, i32
  }
  func.func @transform_1(%arg0: i32, %arg1: i32) -> (i32, i32) {
    %c0_i32 = arith.constant 0 : i32
    %c0_i32_0 = arith.constant 0 : i32
    %c0_i32_1 = arith.constant 0 : i32
    return %c0_i32, %c0_i32_0 : i32, i32
  }
  func.func @transform_2(%arg0: i32, %arg1: i32) -> (i32, i32) {
    %c0_i32 = arith.constant 0 : i32
    %c0_i32_0 = arith.constant 0 : i32
    %c0_i32_1 = arith.constant 0 : i32
    return %c0_i32, %c0_i32_0 : i32, i32
  }
  func.func @transform_3(%arg0: i32, %arg1: i32) -> (i32, i32) {
    %c0_i32 = arith.constant 0 : i32
    %c0_i32_0 = arith.constant 0 : i32
    %c0_i32_1 = arith.constant 0 : i32
    return %c0_i32, %c0_i32_0 : i32, i32
  }
  func.func @transform_4(%arg0: i32, %arg1: i32) -> (i32, i32) {
    %c0_i32 = arith.constant 0 : i32
    %c0_i32_0 = arith.constant 0 : i32
    %c0_i32_1 = arith.constant 0 : i32
    return %c0_i32, %c0_i32_0 : i32, i32
  }
  func.func @transform_5(%arg0: i32, %arg1: i32) -> (i32, i32) {
    %c0_i32 = arith.constant 0 : i32
    %c0_i32_0 = arith.constant 0 : i32
    %c0_i32_1 = arith.constant 0 : i32
    return %c0_i32, %c0_i32_0 : i32, i32
  }
  func.func @transform_6(%arg0: i32, %arg1: i32) -> (i32, i32) {
    %c0_i32 = arith.constant 0 : i32
    %c0_i32_0 = arith.constant 0 : i32
    %c0_i32_1 = arith.constant 0 : i32
    return %c0_i32, %c0_i32_0 : i32, i32
  }
  func.func @transform_7(%arg0: i32, %arg1: i32) -> (i32, i32) {
    %c0_i32 = arith.constant 0 : i32
    %c0_i32_0 = arith.constant 0 : i32
    %c0_i32_1 = arith.constant 0 : i32
    return %c0_i32, %c0_i32_0 : i32, i32
  }
  func.func @transform_8(%arg0: i32, %arg1: i32) -> (i32, i32) {
    %c0_i32 = arith.constant 0 : i32
    %c0_i32_0 = arith.constant 0 : i32
    %c0_i32_1 = arith.constant 0 : i32
    return %c0_i32, %c0_i32_0 : i32, i32
  }
  func.func @transform_9(%arg0: i32, %arg1: i32) -> (i32, i32, i32) {
    %c0_i32 = arith.constant 0 : i32
    %c0_i32_0 = arith.constant 0 : i32
    %c0_i32_1 = arith.constant 0 : i32
    return %arg0, %c0_i32, %c0_i32_0 : i32, i32, i32
  }
}

</mosaic_0001>

<llo_original>
// kernel: tpu_custom_call.1
$region0: #{tpu_custom_call.1}
  #allocation0 [shape = 'u32[]', space=smem, size = 0x4, offset = 0x4, fixed_abs, tag = 'smem constant byte address 0x4 - core index']
  #allocation1 [shape = 'u32[72,128]{1,0:T(1,128)}', space=vmem, size = 0x9000, scoped, tag = 'internal scratch']
  #allocation2 [shape = 'f32[32,128]{1,0:T(8,128)}', space=vmem, size = 0x4000, scoped, tag = 'scratch operand']
  #allocation3 [shape = 'f32[1,1]{1,0:T(1,128)S(1)}', space=vmem, size = 0x200, scoped, tag = 'scoped memory for tpu_custom_call.1']
  %s0 = inlined_call_operand.vmem [shape: bf16[2,4,256], index: 0, kind: input, shape index: {}]
  %s1 = inlined_call_operand.vmem [shape: bf16[32,4], index: 1, kind: input, shape index: {}]
  %s2 = inlined_call_operand.vmem [shape: f32[32,1], index: 2, kind: input, shape index: {}]
  %s3 = inlined_call_operand.vmem [shape: f32[32,32], index: 3, kind: input, shape index: {}]
  %s4 = inlined_call_operand.vmem [shape: f32[32,1], index: 4, kind: input, shape index: {}]
  %s5 = inlined_call_operand.vmem [shape: f32[8,32], index: 5, kind: input, shape index: {}]
  %s6 = inlined_call_operand.vmem [shape: f32[8,1], index: 6, kind: input, shape index: {}]
  %s7 = inlined_call_operand.vmem [shape: f32[1,32], index: 7, kind: input, shape index: {}]
  %s8 = inlined_call_operand.<no memory space> [shape: f32[1,1], index: 8, kind: input, shape index: {}]
  %s9 = inlined_call_operand.vmem [shape: f32[2,41,1], index: 9, kind: output, shape index: {}]
  %s10 = sld [smem:[#allocation0]]
  $region77: #{tpu_custom_call.1} parent=0
    _
  %s12 = ssub.s32 1, %s10
  %s13 = scalar_select 0, %s12, %s10
  %v14 = vstv %s8
  %15 = vst [vmem:[#allocation3] sm:$0x1] %v14
  loop: start=0, step=1, limit=4
  $region2: #{tpu_custom_call.1} parent=0 // loop_pre_header
    _
  $region3: #{tpu_custom_call.1} parent=0 // loop_header
    %s17 = sphi 0, %s21
    %p18 = scmp.ge.s32.totalorder %s17, 4
    %s24 = sphi 0, %s36
    %s25 = sphi 0, %s32
    %s26 = sphi 0, %s24
    %s27 = sphi 0, %s25
    %s28 = sphi 0, %s26
    %s29 = sphi 0, %s27
    %s41 = sphi 0, %s43
    %s44 = sphi 0, %s41
    %s45 = sphi 0, %s44
    %s61 = sphi 0, %s45
    %s65 = sphi 0, %s65
    %s67 = sphi 0, %s65
    %s68 = sphi 0, %s67
    %s82 = sphi 0, %s68
    %s86 = sphi 0, %s86
    %s88 = sphi 0, %s86
    %s89 = sphi 0, %s88
    %s103 = sphi 0, %s89
    %s107 = sphi 0, %s107
    %s109 = sphi 0, %s107
    %s110 = sphi 0, %s109
    %s124 = sphi 0, %s110
    %s128 = sphi 0, %s128
    %s130 = sphi 0, %s128
    %s131 = sphi 0, %s130
    %s145 = sphi 0, %s131
    %s149 = sphi 0, %s149
    %s151 = sphi 0, %s149
    %s152 = sphi 0, %s151
    %s166 = sphi 0, %s152
    %s170 = sphi 0, %s170
    %s172 = sphi 0, %s170
    %s173 = sphi 0, %s172
    %s187 = sphi 0, %s173
    %s191 = sphi 0, %s191
    %s193 = sphi 0, %s191
    %s194 = sphi 0, %s193
    %s208 = sphi 0, %s194
    %s212 = sphi 0, %s212
    %s214 = sphi 0, %s212
    %s215 = sphi 0, %s214
    %s229 = sphi 0, %s215
    %s235 = sphi 0, %s237
    %s238 = sphi 0, %s235
    %s239 = sphi 0, %s238
    %s255 = sphi 0, %s239
  $region4: #{tpu_custom_call.1} parent=0 // loop_header_branch
    %20 = sbr.rel (%p18) target = $region8
  $region5: #{tpu_custom_call.1} parent=0 // loop_body
    %s22 = ssub.s32 %s17, 1
    %s23 = ssub.s32 %s17, 2
    %s30 = sadd.s32 1, %s25
    %p31 = scmp.ge.s32.totalorder %s30, 1
    %s32 = scalar_select %p31, 0, %s30
    %s33 = sadd.s32 1, %s24
    %s34 = scalar_select %p31, %s33, %s24
    %p35 = scmp.ge.s32.totalorder %s34, 2
    %s36 = scalar_select %p35, 0, %s34
    %s37 = ssub.s32 %s24, %s36
    %s38 = ssub.s32 %s25, %s32
    %s39 = sor.u32 %s37, %s38
    %p40 = scmp.eq.s32.totalorder %s39, 0
    %s42 = sadd.s32 %s41, 1
    %s43 = scalar_select %p40, %s41, %s42
    %p46 = pneg %p40
    %p47 = scmp.eq.s32.totalorder %s17, 1
    %p48 = por %p46, %p47
    %p49 = scmp.ne.s32.totalorder %s41, %s44
    %p50 = scmp.eq.s32.totalorder %s17, 0
    %p51 = por %p49, %p50
    %p52 = scmp.ne.s32.totalorder %s41, %s44
    %p53 = scmp.eq.s32.totalorder %s22, 1
    %p54 = por %p52, %p53
    %p55 = scmp.ne.s32.totalorder %s44, %s45
    %p56 = scmp.eq.s32.totalorder %s22, 0
    %p57 = por %p55, %p56
    %p58 = scmp.ne.s32.totalorder %s44, %s45
    %p59 = scmp.eq.s32.totalorder %s23, 1
    %p60 = por %p58, %p59
    %p62 = scmp.ne.s32.totalorder %s45, %s61
    %p63 = scmp.eq.s32.totalorder %s23, 0
    %p64 = por %p62, %p63
    %s66 = sadd.s32 %s65, 1
    %p69 = scmp.eq.s32.totalorder %s17, 1
    %p70 = scmp.ne.s32.totalorder %s65, %s67
    %p71 = scmp.eq.s32.totalorder %s17, 0
    %p72 = por %p70, %p71
    %p73 = scmp.ne.s32.totalorder %s65, %s67
    %p74 = scmp.eq.s32.totalorder %s22, 1
    %p75 = por %p73, %p74
    %p76 = scmp.ne.s32.totalorder %s67, %s68
    %p77 = scmp.eq.s32.totalorder %s22, 0
    %p78 = por %p76, %p77
    %p79 = scmp.ne.s32.totalorder %s67, %s68
    %p80 = scmp.eq.s32.totalorder %s23, 1
    %p81 = por %p79, %p80
    %p83 = scmp.ne.s32.totalorder %s68, %s82
    %p84 = scmp.eq.s32.totalorder %s23, 0
    %p85 = por %p83, %p84
    %s87 = sadd.s32 %s86, 1
    %p90 = scmp.eq.s32.totalorder %s17, 1
    %p91 = scmp.ne.s32.totalorder %s86, %s88
    %p92 = scmp.eq.s32.totalorder %s17, 0
    %p93 = por %p91, %p92
    %p94 = scmp.ne.s32.totalorder %s86, %s88
    %p95 = scmp.eq.s32.totalorder %s22, 1
    %p96 = por %p94, %p95
    %p97 = scmp.ne.s32.totalorder %s88, %s89
    %p98 = scmp.eq.s32.totalorder %s22, 0
    %p99 = por %p97, %p98
    %p100 = scmp.ne.s32.totalorder %s88, %s89
    %p101 = scmp.eq.s32.totalorder %s23, 1
    %p102 = por %p100, %p101
    %p104 = scmp.ne.s32.totalorder %s89, %s103
    %p105 = scmp.eq.s32.totalorder %s23, 0
    %p106 = por %p104, %p105
    %s108 = sadd.s32 %s107, 1
    %p111 = scmp.eq.s32.totalorder %s17, 1
    %p112 = scmp.ne.s32.totalorder %s107, %s109
    %p113 = scmp.eq.s32.totalorder %s17, 0
    %p114 = por %p112, %p113
    %p115 = scmp.ne.s32.totalorder %s107, %s109
    %p116 = scmp.eq.s32.totalorder %s22, 1
    %p117 = por %p115, %p116
    %p118 = scmp.ne.s32.totalorder %s109, %s110
    %p119 = scmp.eq.s32.totalorder %s22, 0
    %p120 = por %p118, %p119
    %p121 = scmp.ne.s32.totalorder %s109, %s110
    %p122 = scmp.eq.s32.totalorder %s23, 1
    %p123 = por %p121, %p122
    %p125 = scmp.ne.s32.totalorder %s110, %s124
    %p126 = scmp.eq.s32.totalorder %s23, 0
    %p127 = por %p125, %p126
    %s129 = sadd.s32 %s128, 1
    %p132 = scmp.eq.s32.totalorder %s17, 1
    %p133 = scmp.ne.s32.totalorder %s128, %s130
    %p134 = scmp.eq.s32.totalorder %s17, 0
    %p135 = por %p133, %p134
    %p136 = scmp.ne.s32.totalorder %s128, %s130
    %p137 = scmp.eq.s32.totalorder %s22, 1
    %p138 = por %p136, %p137
    %p139 = scmp.ne.s32.totalorder %s130, %s131
    %p140 = scmp.eq.s32.totalorder %s22, 0
    %p141 = por %p139, %p140
    %p142 = scmp.ne.s32.totalorder %s130, %s131
    %p143 = scmp.eq.s32.totalorder %s23, 1
    %p144 = por %p142, %p143
    %p146 = scmp.ne.s32.totalorder %s131, %s145
    %p147 = scmp.eq.s32.totalorder %s23, 0
    %p148 = por %p146, %p147
    %s150 = sadd.s32 %s149, 1
    %p153 = scmp.eq.s32.totalorder %s17, 1
    %p154 = scmp.ne.s32.totalorder %s149, %s151
    %p155 = scmp.eq.s32.totalorder %s17, 0
    %p156 = por %p154, %p155
    %p157 = scmp.ne.s32.totalorder %s149, %s151
    %p158 = scmp.eq.s32.totalorder %s22, 1
    %p159 = por %p157, %p158
    %p160 = scmp.ne.s32.totalorder %s151, %s152
    %p161 = scmp.eq.s32.totalorder %s22, 0
    %p162 = por %p160, %p161
    %p163 = scmp.ne.s32.totalorder %s151, %s152
    %p164 = scmp.eq.s32.totalorder %s23, 1
    %p165 = por %p163, %p164
    %p167 = scmp.ne.s32.totalorder %s152, %s166
    %p168 = scmp.eq.s32.totalorder %s23, 0
    %p169 = por %p167, %p168
    %s171 = sadd.s32 %s170, 1
    %p174 = scmp.eq.s32.totalorder %s17, 1
    %p175 = scmp.ne.s32.totalorder %s170, %s172
    %p176 = scmp.eq.s32.totalorder %s17, 0
    %p177 = por %p175, %p176
    %p178 = scmp.ne.s32.totalorder %s170, %s172
    %p179 = scmp.eq.s32.totalorder %s22, 1
    %p180 = por %p178, %p179
    %p181 = scmp.ne.s32.totalorder %s172, %s173
    %p182 = scmp.eq.s32.totalorder %s22, 0
    %p183 = por %p181, %p182
    %p184 = scmp.ne.s32.totalorder %s172, %s173
    %p185 = scmp.eq.s32.totalorder %s23, 1
    %p186 = por %p184, %p185
    %p188 = scmp.ne.s32.totalorder %s173, %s187
    %p189 = scmp.eq.s32.totalorder %s23, 0
    %p190 = por %p188, %p189
    %s192 = sadd.s32 %s191, 1
    %p195 = scmp.eq.s32.totalorder %s17, 1
    %p196 = scmp.ne.s32.totalorder %s191, %s193
    %p197 = scmp.eq.s32.totalorder %s17, 0
    %p198 = por %p196, %p197
    %p199 = scmp.ne.s32.totalorder %s191, %s193
    %p200 = scmp.eq.s32.totalorder %s22, 1
    %p201 = por %p199, %p200
    %p202 = scmp.ne.s32.totalorder %s193, %s194
    %p203 = scmp.eq.s32.totalorder %s22, 0
    %p204 = por %p202, %p203
    %p205 = scmp.ne.s32.totalorder %s193, %s194
    %p206 = scmp.eq.s32.totalorder %s23, 1
    %p207 = por %p205, %p206
    %p209 = scmp.ne.s32.totalorder %s194, %s208
    %p210 = scmp.eq.s32.totalorder %s23, 0
    %p211 = por %p209, %p210
    %s213 = sadd.s32 %s212, 1
    %p216 = scmp.eq.s32.totalorder %s17, 1
    %p217 = scmp.ne.s32.totalorder %s212, %s214
    %p218 = scmp.eq.s32.totalorder %s17, 0
    %p219 = por %p217, %p218
    %p220 = scmp.ne.s32.totalorder %s212, %s214
    %p221 = scmp.eq.s32.totalorder %s22, 1
    %p222 = por %p220, %p221
    %p223 = scmp.ne.s32.totalorder %s214, %s215
    %p224 = scmp.eq.s32.totalorder %s22, 0
    %p225 = por %p223, %p224
    %p226 = scmp.ne.s32.totalorder %s214, %s215
    %p227 = scmp.eq.s32.totalorder %s23, 1
    %p228 = por %p226, %p227
    %p230 = scmp.ne.s32.totalorder %s215, %s229
    %p231 = scmp.eq.s32.totalorder %s23, 0
    %p232 = por %p230, %p231
    %s233 = ssub.s32 %s24, %s36
    %p234 = scmp.eq.s32.totalorder %s233, 0
    %s236 = sadd.s32 %s235, 1
    %s237 = scalar_select %p234, %s235, %s236
    %p240 = pneg %p234
    %p241 = scmp.eq.s32.totalorder %s17, 1
    %p242 = por %p240, %p241
    %p243 = scmp.ne.s32.totalorder %s235, %s238
    %p244 = scmp.eq.s32.totalorder %s17, 0
    %p245 = por %p243, %p244
    %p246 = scmp.ne.s32.totalorder %s235, %s238
    %p247 = scmp.eq.s32.totalorder %s22, 1
    %p248 = por %p246, %p247
    %p249 = scmp.ne.s32.totalorder %s238, %s239
    %p250 = scmp.eq.s32.totalorder %s22, 0
    %p251 = por %p249, %p250
    %p252 = scmp.ne.s32.totalorder %s238, %s239
    %p253 = scmp.eq.s32.totalorder %s23, 1
    %p254 = por %p252, %p253
    %p256 = scmp.ne.s32.totalorder %s239, %s255
    %p257 = scmp.eq.s32.totalorder %s23, 0
    %p258 = por %p256, %p257
    %p259 = scmp.le.s32.totalorder 1, %s17
    %p260 = scmp.lt.s32.totalorder %s17, 3
    %p261 = pnand %p259, %p260
    %p262 = pneg %p261
    // Predicated region
    $region9: #{tpu_custom_call.1} parent=5 // pred_check
      _
    $region10: #{tpu_custom_call.1} parent=5 // pred_check_branch
      %264 = sbr.rel (%p261) target = $region12
    $region11: #{tpu_custom_call.1} parent=5 // pred_region
      %s265 = ssub.s32 %s17, 1
      // Predicated region
      $region13: #{tpu_custom_call.1} parent=11 // pred_check
        %p266 = pneg %p78
      $region14: #{tpu_custom_call.1} parent=11 // pred_check_branch
        %268 = sbr.rel (%p266) target = $region16
      $region15: #{tpu_custom_call.1} parent=11 // pred_region
        _
      $region16: #{tpu_custom_call.1} parent=11 // pred_fallthru
        _
      // Predicated region
      $region17: #{tpu_custom_call.1} parent=11 // pred_check
        %p269 = pneg %p99
      $region18: #{tpu_custom_call.1} parent=11 // pred_check_branch
        %271 = sbr.rel (%p269) target = $region20
      $region19: #{tpu_custom_call.1} parent=11 // pred_region
        _
      $region20: #{tpu_custom_call.1} parent=11 // pred_fallthru
        _
      // Predicated region
      $region21: #{tpu_custom_call.1} parent=11 // pred_check
        %p272 = pneg %p120
      $region22: #{tpu_custom_call.1} parent=11 // pred_check_branch
        %274 = sbr.rel (%p272) target = $region24
      $region23: #{tpu_custom_call.1} parent=11 // pred_region
        _
      $region24: #{tpu_custom_call.1} parent=11 // pred_fallthru
        _
      // Predicated region
      $region25: #{tpu_custom_call.1} parent=11 // pred_check
        %p275 = pneg %p141
      $region26: #{tpu_custom_call.1} parent=11 // pred_check_branch
        %277 = sbr.rel (%p275) target = $region28
      $region27: #{tpu_custom_call.1} parent=11 // pred_region
        _
      $region28: #{tpu_custom_call.1} parent=11 // pred_fallthru
        _
      // Predicated region
      $region29: #{tpu_custom_call.1} parent=11 // pred_check
        %p278 = pneg %p162
      $region30: #{tpu_custom_call.1} parent=11 // pred_check_branch
        %280 = sbr.rel (%p278) target = $region32
      $region31: #{tpu_custom_call.1} parent=11 // pred_region
        _
      $region32: #{tpu_custom_call.1} parent=11 // pred_fallthru
        _
      // Predicated region
      $region33: #{tpu_custom_call.1} parent=11 // pred_check
        %p281 = pneg %p183
      $region34: #{tpu_custom_call.1} parent=11 // pred_check_branch
        %283 = sbr.rel (%p281) target = $region36
      $region35: #{tpu_custom_call.1} parent=11 // pred_region
        _
      $region36: #{tpu_custom_call.1} parent=11 // pred_fallthru
        _
      // Predicated region
      $region37: #{tpu_custom_call.1} parent=11 // pred_check
        %p284 = pneg %p204
      $region38: #{tpu_custom_call.1} parent=11 // pred_check_branch
        %286 = sbr.rel (%p284) target = $region40
      $region39: #{tpu_custom_call.1} parent=11 // pred_region
        _
      $region40: #{tpu_custom_call.1} parent=11 // pred_fallthru
        _
      // Predicated region
      $region41: #{tpu_custom_call.1} parent=11 // pred_check
        %p287 = pneg %p225
      $region42: #{tpu_custom_call.1} parent=11 // pred_check_branch
        %289 = sbr.rel (%p287) target = $region44
      $region43: #{tpu_custom_call.1} parent=11 // pred_region
        _
      $region44: #{tpu_custom_call.1} parent=11 // pred_fallthru
        _
    $region12: #{tpu_custom_call.1} parent=5 // pred_fallthru
      _
    %p290 = scmp.lt.s32.totalorder %s17, 2
    // Predicated region
    $region45: #{tpu_custom_call.1} parent=5 // pred_check
      %p291 = pneg %p290
    $region46: #{tpu_custom_call.1} parent=5 // pred_check_branch
      %293 = sbr.rel (%p291) target = $region48
    $region47: #{tpu_custom_call.1} parent=5 // pred_region
      // Predicated region
      $region49: #{tpu_custom_call.1} parent=47 // pred_check
        %p294 = pneg %p51
      $region50: #{tpu_custom_call.1} parent=47 // pred_check_branch
        %296 = sbr.rel (%p294) target = $region52
      $region51: #{tpu_custom_call.1} parent=47 // pred_region
        %s297 = smul.u32 2, %s25
        %p298 = scmp.lt.s32.totalorder %s24, 1
        %s299 = scalar_select %p298, %s24, 1
        %p300 = scmp.lt.s32.totalorder %s297, 1
        %s301 = scalar_select %p300, %s297, 1
        %s302 = smul.addr %s299, 2
        %s303 = sadd.s32 %s301, %s302
        %s304 = smul.addr %s303, 2
        %s305 = scalar_lea.vmem %s0, %s304
        %s306 = smul.u32 2, %s25
      $region52: #{tpu_custom_call.1} parent=47 // pred_fallthru
        _
    $region48: #{tpu_custom_call.1} parent=5 // pred_fallthru
      _
    %p307 = scmp.le.s32.totalorder 1, %s17
    %p308 = scmp.lt.s32.totalorder %s17, 3
    %p309 = pnand %p307, %p308
    %p310 = pneg %p309
    // Predicated region
    $region53: #{tpu_custom_call.1} parent=5 // pred_check
      _
    $region54: #{tpu_custom_call.1} parent=5 // pred_check_branch
      %312 = sbr.rel (%p309) target = $region56
    $region55: #{tpu_custom_call.1} parent=5 // pred_region
      %s313 = ssub.s32 %s17, 1
      %s314 = smul.u32 2, %s27
      %p315 = scmp.lt.s32.totalorder %s26, 1
      %s316 = scalar_select %p315, %s26, 1
      %p317 = scmp.lt.s32.totalorder %s314, 1
      %s318 = scalar_select %p317, %s314, 1
      %s319 = smul.addr %s316, 2
      %s320 = sadd.s32 %s318, %s319
      %s321 = smul.addr %s320, 2
      %s322 = scalar_lea.vmem %s0, %s321
      %p323 = pneg %p57
      %p324 = pneg %p54
      %p325 = pneg %p78
      %p326 = pneg %p75
      %p327 = pneg %p99
      %p328 = pneg %p96
      %p329 = pneg %p120
      %p330 = pneg %p117
      %p331 = pneg %p141
      %p332 = pneg %p138
      %p333 = pneg %p162
      %p334 = pneg %p159
      %p335 = pneg %p183
      %p336 = pneg %p180
      %p337 = pneg %p204
      %p338 = pneg %p201
      %p339 = pneg %p225
      %p340 = pneg %p222
      %p341 = pneg %p251
      %p342 = pneg %p248
      %p343 = scmp.lt.s32.totalorder %s26, 1
      %s344 = scalar_select %p343, %s26, 1
      %s345 = smul.addr %s344, 6
      %s346 = smul.addr %s345, 8
      %s347 = scalar_lea.vmem %s9, %s346
      %s348 = smul.u32 2, %s27
      %p349 = scmp.lt.s32.totalorder %s26, 1
      %s350 = scalar_select %p349, %s26, 1
      %p351 = scmp.lt.s32.totalorder %s348, 1
      %s352 = scalar_select %p351, %s348, 1
      %s353 = smul.addr %s350, 2
      %s354 = sadd.s32 %s352, %s353
      %s355 = smul.addr %s354, 2
      %s356 = scalar_lea.vmem %s0, %s355
      %s357 = smul.u32 2, %s27
      %p358 = scmp.lt.s32.totalorder %s26, 1
      %s359 = scalar_select %p358, %s26, 1
      %s360 = smul.addr %s359, 6
      %s361 = smul.addr %s360, 8
      %s362 = scalar_lea.vmem %s9, %s361
      %p364 = scmp.eq.s32.totalorder %s27, 0
      // Predicated region
      $region57: #{tpu_custom_call.1} parent=55 // pred_check
        %p365 = pneg %p364
      $region58: #{tpu_custom_call.1} parent=55 // pred_check_branch
        %367 = sbr.rel (%p365) target = $region60
      $region59: #{tpu_custom_call.1} parent=55 // pred_region
        %368 = vst [vmem:[#allocation2] sm:$0xff] 0.0
        %369 = vst [vmem:[#allocation2 + $0x8] sm:$0xff] 0.0
        %370 = vst [vmem:[#allocation2 + $0x10] sm:$0xff] 0.0
        %371 = vst [vmem:[#allocation2 + $0x18] sm:$0xff] 0.0
      $region60: #{tpu_custom_call.1} parent=55 // pred_fallthru
        _
      %v372 = vld [vmem:[%s356] sm:$0xf]
      %v373 = vld [vmem:[%s1] sm:$0xf]
      %v374 = vld [vmem:[%s1 + $0x4] sm:$0xf]
      %v375 = vld [vmem:[%s1 + $0x8] sm:$0xf]
      %v376 = vld [vmem:[%s1 + $0xc] sm:$0xf]
      %v377 = vld [vmem:[%s2] sm:$0xff]
      %v378 = vld [vmem:[%s2 + $0x8] sm:$0xff]
      %v379 = vld [vmem:[%s2 + $0x10] sm:$0xff]
      %v380 = vld [vmem:[%s2 + $0x18] sm:$0xff]
      %382 = vset.pattern.permute.xlu0 0
      %383 = vperm.xlu0 %382, %v377
      %v384 = vpop.permute.xlu0 %383
      %387 = vset.pattern.permute.xlu0 0
      %388 = vperm.xlu0 %387, %v378
      %v389 = vpop.permute.xlu0 %388
      %392 = vset.pattern.permute.xlu0 0
      %393 = vperm.xlu0 %392, %v379
      %v394 = vpop.permute.xlu0 %393
      %397 = vset.pattern.permute.xlu0 0
      %398 = vperm.xlu0 %397, %v380
      %v399 = vpop.permute.xlu0 %398
      %v405 = vunpack.c.l.b16 %v373
      %v406 = vunpack.c.l.b16 %v374
      %v407 = vunpack.c.l.b16 %v375
      %v408 = vunpack.c.l.b16 %v376
      %v409 = vpack.c.b16 %v406, %v405
      %v410 = vpack.c.b16 %v408, %v407
      %412 = vst [vmem:[#allocation1] ss:$4 sm:$0xff] %v372
      %v413 = vld.sshfl [vmem:[#allocation1] sm:$0xff pattern:$0x73625140]
      %v414 = vld.sshfl [vmem:[#allocation1 + $0x8] sm:$0xff pattern:$0x73625140]
      %vm415 = vcmask 31744
      %v417 = vsel %vm415, %v409, 0
      %v420 = vsel %vm415, %v410, 0
      %vm422 = vcmask 1041408
      %v423 = vsel %vm422, %v413, 0
      %v425 = vsel %vm422, %v414, 0
      %427 = vmatpush.bf16.msra.mxu0 0
      %428 = vmatpush.bf16.msra.mxu0 0
      %429 = vmatpush.bf16.msra.mxu0 0
      %430 = vmatpush.bf16.msra.mxu0 0
      %431 = vmatpush.bf16.msra.mxu0 0
      %432 = vmatpush.bf16.msra.mxu0 0
      %433 = vmatpush.bf16.msra.mxu0 0
      %434 = vmatpush.bf16.msra.mxu0 %v423
      %435 = vmatmul.bf16.gmra.mxu0 %v417
      %v436 = vpop.f32.mrf.mxu0
      %v437 = vadd.f32 %v384, %v436
      %v438 = vpop.f32.mrf.mxu0
      %v439 = vadd.f32 %v389, %v438
      %440 = vmatmul.bf16.gmra.mxu0 %v420
      %v441 = vpop.f32.mrf.mxu0
      %v442 = vadd.f32 %v394, %v441
      %v443 = vpop.f32.mrf.mxu0
      %v444 = vadd.f32 %v399, %v443
      %445 = vdwg.mxu0
      %446 = vmatpush.bf16.msra.mxu0 0
      %447 = vmatpush.bf16.msra.mxu0 0
      %448 = vmatpush.bf16.msra.mxu0 0
      %449 = vmatpush.bf16.msra.mxu0 0
      %450 = vmatpush.bf16.msra.mxu0 0
      %451 = vmatpush.bf16.msra.mxu0 0
      %452 = vmatpush.bf16.msra.mxu0 0
      %453 = vmatpush.bf16.msra.mxu0 %v425
      %454 = vmatmul.bf16.gmra.mxu0 %v417
      %v455 = vpop.f32.mrf.mxu0
      %v456 = vadd.f32 %v384, %v455
      %v457 = vpop.f32.mrf.mxu0
      %v458 = vadd.f32 %v389, %v457
      %459 = vmatmul.bf16.gmra.mxu0 %v420
      %v460 = vpop.f32.mrf.mxu0
      %v461 = vadd.f32 %v394, %v460
      %v462 = vpop.f32.mrf.mxu0
      %v463 = vadd.f32 %v399, %v462
      %464 = vdwg.mxu0
      %v465 = vmax.f32 %v437, 0.0
      %v466 = vmax.f32 %v456, 0.0
      %v467 = vmax.f32 %v439, 0.0
      %v468 = vmax.f32 %v458, 0.0
      %v469 = vmax.f32 %v442, 0.0
      %v470 = vmax.f32 %v461, 0.0
      %v471 = vmax.f32 %v444, 0.0
      %v472 = vmax.f32 %v463, 0.0
      %v473 = vadd.f32 %v465, %v466
      %v474 = vadd.f32 %v467, %v468
      %v475 = vadd.f32 %v469, %v470
      %v476 = vadd.f32 %v471, %v472
      %v477 = vld [vmem:[#allocation2] sm:$0xff]
      %v478 = vld [vmem:[#allocation2 + $0x8] sm:$0xff]
      %v479 = vld [vmem:[#allocation2 + $0x10] sm:$0xff]
      %v480 = vld [vmem:[#allocation2 + $0x18] sm:$0xff]
      %v481 = vadd.f32 %v477, %v473
      %v482 = vadd.f32 %v478, %v474
      %v483 = vadd.f32 %v479, %v475
      %v484 = vadd.f32 %v480, %v476
      %485 = vst [vmem:[#allocation2] sm:$0xff] %v481
      %486 = vst [vmem:[#allocation2 + $0x8] sm:$0xff] %v482
      %487 = vst [vmem:[#allocation2 + $0x10] sm:$0xff] %v483
      %488 = vst [vmem:[#allocation2 + $0x18] sm:$0xff] %v484
      // Predicated region
      $region61: #{tpu_custom_call.1} parent=55 // pred_check
        %p489 = pneg %p364
      $region62: #{tpu_custom_call.1} parent=55 // pred_check_branch
        %491 = sbr.rel (%p489) target = $region64
      $region63: #{tpu_custom_call.1} parent=55 // pred_region
        %v492 = vld [vmem:[#allocation2] sm:$0xff]
        %v493 = vld [vmem:[#allocation2 + $0x8] sm:$0xff]
        %v494 = vld [vmem:[#allocation2 + $0x10] sm:$0xff]
        %v495 = vld [vmem:[#allocation2 + $0x18] sm:$0xff]
        %496 = vadd.xlane.f32.xlu0 %v492
        %v497 = vpop.xlane.xlu0 %496
        %498 = vadd.xlane.f32.xlu0 %v493
        %v499 = vpop.xlane.xlu0 %498
        %500 = vadd.xlane.f32.xlu0 %v494
        %v501 = vpop.xlane.xlu0 %500
        %502 = vadd.xlane.f32.xlu0 %v495
        %v503 = vpop.xlane.xlu0 %502
        %v504 = vmul.f32 %v497, 0.00390625
        %v505 = vmul.f32 %v499, 0.00390625
        %v506 = vmul.f32 %v501, 0.00390625
        %v507 = vmul.f32 %v503, 0.00390625
        %v508 = vld [vmem:[%s3] sm:$0xff]
        %v509 = vld [vmem:[%s3 + $0x8] sm:$0xff]
        %v510 = vld [vmem:[%s3 + $0x10] sm:$0xff]
        %v511 = vld [vmem:[%s3 + $0x18] sm:$0xff]
        %v512 = vld [vmem:[%s4] sm:$0xff]
        %v513 = vld [vmem:[%s4 + $0x8] sm:$0xff]
        %v514 = vld [vmem:[%s4 + $0x10] sm:$0xff]
        %v515 = vld [vmem:[%s4 + $0x18] sm:$0xff]
        %v516 = vld [vmem:[%s5] sm:$0xff]
        %v517 = vld [vmem:[%s6] sm:$0xff]
        %v518 = vld [vmem:[%s7] sm:$0x1]
        %v519 = vld [vmem:[#allocation3] sm:$0x1]
        %vm520 = vcmask 261120
        %v522 = vsel %vm520, %v508, 0
        %v525 = vsel %vm520, %v509, 0
        %v528 = vsel %vm520, %v510, 0
        %v531 = vsel %vm520, %v511, 0
        %533 = vmatpush.msra.mxu0 0.0
        %534 = vmatpush.msra.mxu0 0.0
        %535 = vmatpush.msra.mxu0 0.0
        %536 = vmatpush.msra.mxu0 0.0
        %537 = vmatpush.msra.mxu0 0.0
        %538 = vmatpush.msra.mxu0 0.0
        %539 = vmatpush.msra.mxu0 0.0
        %540 = vmatpush.msra.mxu0 0.0
        %541 = vmatpush.msra.mxu0 0.0
        %542 = vmatpush.msra.mxu0 0.0
        %543 = vmatpush.msra.mxu0 0.0
        %544 = vmatpush.msra.mxu0 0.0
        %545 = vmatpush.msra.mxu0 %v507
        %546 = vmatpush.msra.mxu0 %v506
        %547 = vmatpush.msra.mxu0 %v505
        %548 = vmatpush.msra.mxu0 %v504
        %549 = vmatmul.f32.gmra.mxu0 %v522
        %v550 = vpop.f32.mrf.mxu0
        %v551 = vadd.f32 %v512, %v550
        %552 = vmatmul.f32.gmra.mxu0 %v525
        %v553 = vpop.f32.mrf.mxu0
        %v554 = vadd.f32 %v513, %v553
        %555 = vmatmul.f32.gmra.mxu0 %v528
        %v556 = vpop.f32.mrf.mxu0
        %v557 = vadd.f32 %v514, %v556
        %558 = vmatmul.f32.gmra.mxu0 %v531
        %v559 = vpop.f32.mrf.mxu0
        %v560 = vadd.f32 %v515, %v559
        %561 = vdwg.mxu0
        %v562 = vmax.f32 %v551, 0.0
        %v563 = vmax.f32 %v554, 0.0
        %v564 = vmax.f32 %v557, 0.0
        %v565 = vmax.f32 %v560, 0.0
        %v567 = vsel %vm520, %v516, 0
        %569 = vmatpush.msra.mxu0 0.0
        %570 = vmatpush.msra.mxu0 0.0
        %571 = vmatpush.msra.mxu0 0.0
        %572 = vmatpush.msra.mxu0 0.0
        %573 = vmatpush.msra.mxu0 0.0
        %574 = vmatpush.msra.mxu0 0.0
        %575 = vmatpush.msra.mxu0 0.0
        %576 = vmatpush.msra.mxu0 0.0
        %577 = vmatpush.msra.mxu0 0.0
        %578 = vmatpush.msra.mxu0 0.0
        %579 = vmatpush.msra.mxu0 0.0
        %580 = vmatpush.msra.mxu0 0.0
        %581 = vmatpush.msra.mxu0 %v565
        %582 = vmatpush.msra.mxu0 %v564
        %583 = vmatpush.msra.mxu0 %v563
        %584 = vmatpush.msra.mxu0 %v562
        %585 = vmatmul.f32.gmra.mxu0 %v567
        %v586 = vpop.f32.mrf.mxu0
        %v587 = vadd.f32 %v517, %v586
        %588 = vdwg.mxu0
        %v590 = vsel %vm520, %v518, 0
        %592 = vmatpush.msra.mxu0 0.0
        %593 = vmatpush.msra.mxu0 0.0
        %594 = vmatpush.msra.mxu0 0.0
        %595 = vmatpush.msra.mxu0 0.0
        %596 = vmatpush.msra.mxu0 0.0
        %597 = vmatpush.msra.mxu0 0.0
        %598 = vmatpush.msra.mxu0 0.0
        %599 = vmatpush.msra.mxu0 0.0
        %600 = vmatpush.msra.mxu0 0.0
        %601 = vmatpush.msra.mxu0 0.0
        %602 = vmatpush.msra.mxu0 0.0
        %603 = vmatpush.msra.mxu0 0.0
        %604 = vmatpush.msra.mxu0 %v507
        %605 = vmatpush.msra.mxu0 %v506
        %606 = vmatpush.msra.mxu0 %v505
        %607 = vmatpush.msra.mxu0 %v504
        %608 = vmatmul.f32.gmra.mxu0 %v590
        %v609 = vpop.f32.mrf.mxu0
        %v610 = vadd.f32 %v519, %v609
        %611 = vdwg.mxu0
        %v612 = vxor.u32 %v610, 2147483648
        %v613 = vmul.f32 %v612, 1.442695
        %v614 = vpow.pop %v613
        %v615 = vadd.f32 %v614, 1.0
        %v616 = vrcp.pop %v615
        %v617 = vmul.f32 %v615, %v616
        %v618 = vsub.f32 1.0, %v617
        %v619 = vmul.f32 %v616, %v618
        %v620 = vadd.f32 %v616, %v619
        %vm621 = vweird.f32 %v615
        %vm622 = vweird.f32 %v616
        %vm623 = vmor %vm621, %vm622
        %v624 = vsel %vm623, %v616, %v620
        %v625 = vand.u32 2147483647, %v615
        %vm626 = vcmp.eq.f32.partialorder %v625, 8.507059e+37
        %v627 = vand.u32 %v615, 2147483648
        %v628 = vor.u32 1.1754944e-38, %v627
        %v629 = vsel %vm626, %v628, %v624
        %v630 = vmul.f32 1.0, %v629
        %vm631 = vcmask 7168
        %632 = vst.msk [vmem:[%s362] sm:$0xff] %vm631, %v587
        %633 = vst.msk [vmem:[%s362 + $0x8] sm:$0xff] %vm631, %v562
        %634 = vst.msk [vmem:[%s362 + $0x10] sm:$0xff] %vm631, %v563
        %635 = vst.msk [vmem:[%s362 + $0x18] sm:$0xff] %vm631, %v564
        %636 = vst.msk [vmem:[%s362 + $0x20] sm:$0xff] %vm631, %v565
        %vm637 = vcmask 0
        %638 = vst.msk [vmem:[%s362 + $0x28] sm:$0x1] %vm637, %v630
      $region64: #{tpu_custom_call.1} parent=55 // pred_fallthru
        _
      %p639 = scmp.lt.s32.totalorder %s26, 1
      %s640 = scalar_select %p639, %s26, 1
      %s641 = smul.addr %s640, 6
      %s642 = smul.addr %s641, 8
      %s643 = scalar_lea.vmem %s9, %s642
      // Predicated region
      $region65: #{tpu_custom_call.1} parent=55 // pred_check
        %p644 = pneg %p248
      $region66: #{tpu_custom_call.1} parent=55 // pred_check_branch
        %646 = sbr.rel (%p644) target = $region68
      $region67: #{tpu_custom_call.1} parent=55 // pred_region
        _
      $region68: #{tpu_custom_call.1} parent=55 // pred_fallthru
        _
    $region56: #{tpu_custom_call.1} parent=5 // pred_fallthru
      _
    %p647 = scmp.le.s32.totalorder 2, %s17
    // Predicated region
    $region69: #{tpu_custom_call.1} parent=5 // pred_check
      %p648 = pneg %p647
    $region70: #{tpu_custom_call.1} parent=5 // pred_check_branch
      %650 = sbr.rel (%p648) target = $region72
    $region71: #{tpu_custom_call.1} parent=5 // pred_region
      %s651 = ssub.s32 %s17, 2
      // Predicated region
      $region73: #{tpu_custom_call.1} parent=71 // pred_check
        %p652 = pneg %p254
      $region74: #{tpu_custom_call.1} parent=71 // pred_check_branch
        %654 = sbr.rel (%p652) target = $region76
      $region75: #{tpu_custom_call.1} parent=71 // pred_region
        %p655 = scmp.lt.s32.totalorder %s28, 1
        %s656 = scalar_select %p655, %s28, 1
        %s657 = smul.addr %s656, 6
        %s658 = smul.addr %s657, 8
        %s659 = scalar_lea.vmem %s9, %s658
      $region76: #{tpu_custom_call.1} parent=71 // pred_fallthru
        _
    $region72: #{tpu_custom_call.1} parent=5 // pred_fallthru
      _
  $region6: #{tpu_custom_call.1} parent=0 // loop_footer
    %s21 = sadd.s32 1, %s17
  $region7: #{tpu_custom_call.1} parent=0 // loop_footer_branch
    %16 = sbr.rel target = $region3
  $region8: #{tpu_custom_call.1} parent=0 // loop_exit
    _

</llo_original>
